<compile_context>
chip_gen: v6e
topology: v6e:2x2x1
jax: 0.10.0
libtpu: 0.0.40
codegen_flags: <defaults>
</compile_context>

<pallas_src>
import functools

import jax
import jax.numpy as jnp
from jax.experimental import pallas as pl
from jax.experimental.pallas import tpu as pltpu


# ----------------------------------------------------------------------------
# Hardware / VMEM planning
# ----------------------------------------------------------------------------
def _tpu_hw_info():
    """Return (vmem_capacity_bytes, tensorcores_per_device, bf16_native_vpu).

    Conservative fallbacks if the queries fail.
    """
    kind = ""
    try:
        kind = jax.devices()[0].device_kind.lower()
    except Exception:
        pass
    vmem = None
    try:
        vmem = getattr(pltpu.get_tpu_info(), "vmem_capacity_bytes", None)
    except Exception:
        vmem = None
    if not vmem:
        if "v2" in kind or "v3" in kind:
            vmem = 16 * 1024 * 1024
        elif "v4" in kind or "v5" in kind or "v6" in kind:
            vmem = 128 * 1024 * 1024
        else:                          # v7x or unknown -> conservative 64 MiB
            vmem = 64 * 1024 * 1024
    num_tc = 2 if ("v7" in kind or "v4" in kind) else 1   # >1 TC per Pallas device
    bf16_vpu = ("v6" in kind) or ("v7" in kind)           # v5e has no bf16 VALU
    return int(vmem), num_tc, bf16_vpu


def _vmem_plan(vmem_capacity):
    """Scoped-VMEM limit to request and the byte budget the tile picker may spend
    on pipelined buffers + in-kernel f32 temporaries."""
    if vmem_capacity <= 64 * 1024 * 1024:
        limit = 48 * 1024 * 1024        # v7x: 64 MiB/TC -> leave headroom
    else:
        limit = 80 * 1024 * 1024        # v5e/v6e: 128 MiB physical
    limit = min(limit, (3 * vmem_capacity) // 4)
    headroom = 2 * 1024 * 1024          # Mosaic internal scratch, semaphores, ...
    return int(limit), int(limit - headroom)


def _divisors_desc(n):
    return [d for d in range(n, 0, -1) if n % d == 0]


def _pick_tiling(B, S, D, enc_bytes, g_bytes, out_bytes, budget, num_tc,
                 force_s_block=None):
    """Choose (batch_block, seq_block).

    seq_block is None for the batch-blocked path (softmax fully in-kernel);
    otherwise the sequence-tiled online-softmax path is used.  The budget
    accounts for ALL pipelined buffers plus one slab-sized f32 temporary for the
    broadcast-multiply feeding the lane reduce.
    """
    tmp_bytes = 4 if enc_bytes >= 4 else 8   # f32 product (+ f32 upcast copy if narrow)

    def a_cost(tb):
        return (2 * tb * S * D * enc_bytes      # double-buffered encoder slab
                + 2 * tb * D * g_bytes          # double-buffered projected hidden
                + 2 * tb * S * out_bytes        # double-buffered output slab
                + tb * S * D * tmp_bytes)       # in-kernel f32 temporary

    def b_cost(tb, ts):
        return (2 * tb * ts * D * enc_bytes
                + 2 * tb * D * g_bytes
                + 2 * tb * ts * 4               # raw f32 scores block
                + 4 * tb * 4                    # (max, sum-exp) row stats
                + tb * ts * D * tmp_bytes)

    bdivs = _divisors_desc(B)
    # tb % 8 == 0 keeps the sublane dim of every block tile-aligned; tb == B is the
    # "block == full array dim" escape hatch for small / unaligned batches.
    aligned = [t for t in bdivs if t % 8 == 0]

    if force_s_block is None:
        if num_tc > 1:                           # >= 1 grid step per TensorCore
            for t in aligned:                    # (multi-TC chips only, per review)
                if B // t >= num_tc and a_cost(t) <= budget:
                    return t, None
        for t in aligned:
            if a_cost(t) <= budget:
                return t, None
        if a_cost(B) <= budget:                  # tiny / unaligned batch that fits
            return B, None

    # Sequence-tiled online-softmax path.
    tb_cands = aligned + ([B] if B not in aligned else [])
    if force_s_block is not None:
        ts_cands = [force_s_block]
    else:
        ts_cands = [t for t in _divisors_desc(S) if t % 128 == 0]
        # TODO(synk): masked S tiling (iota-based) for sequence lengths without a
        # 128-multiple divisor; until then fall back to the full-S block.
        if not ts_cands:
            ts_cands = [S]
    fits = [(tb, ts) for tb in tb_cands for ts in ts_cands if b_cost(tb, ts) <= budget]
    if fits:
        if num_tc > 1:
            pref = [c for c in fits if B // c[0] >= num_tc]
            if pref:
                return max(pref, key=lambda c: c[0] * c[1])
        return max(fits, key=lambda c: c[0] * c[1])
    # Nothing fits the budget: smallest legal blocks, let the compiler try.
    return min(tb_cands), min(ts_cands)


# ----------------------------------------------------------------------------
# Kernels
# ----------------------------------------------------------------------------
def _row_scores(e, g, upcast):
    """scores[b, t] = <e[b, t, :], g[b, :]> as f32.   e: (TB, TS, D), g: (TB, D).

    VPU broadcast-multiply + XLU lane reduce with f32 accumulation (MXU matvecs
    with N=1 would be slower than the HBM stream here).
    # TODO(synk): if a bundle dump ever shows the XLU reduce binding (possible on
    # v7x's 3.2 TB/s HBM at large D), pre-accumulate the D/128 lane chunks with
    # VPU adds so only one lane reduce per row remains.
    """
    if upcast:
        # v5e (no bf16 VALU) or f32 inputs: multiply in f32.
        e = e.astype(jnp.float32)
        g = g.astype(jnp.float32)
    else:
        # bf16-native VPU (v6e/v7x): multiply in bf16, accumulate the reduce in f32.
        g = g.astype(e.dtype)
    return jnp.sum(e * g[:, None, :], axis=-1, dtype=jnp.float32)


def _softmax_scores_kernel(enc_ref, g_ref, out_ref, *, upcast):
    # enc_ref: (TB, S, D), g_ref: (TB, D), out_ref: (TB, S)  (lane-dense seq axis)
    s = _row_scores(enc_ref[...], g_ref[...], upcast)            # (TB, S) f32
    m = jnp.max(s, axis=-1, keepdims=True)
    ex = jnp.exp(s - m)
    denom = jnp.sum(ex, axis=-1, keepdims=True)
    out_ref[...] = (ex / denom).astype(out_ref.dtype)            # exact normalization


def _scores_online_kernel(enc_ref, g_ref, s_ref, m_ref, l_ref, *, upcast):
    # Sequence-tiled pass 1: raw f32 scores + online (max, sum-exp) row stats.
    # enc_ref: (TB, TS, D); g_ref: (TB, D); s_ref: (TB, TS) f32
    # m_ref, l_ref: (TB, 1) f32 accumulator outputs, resident across the S axis.
    j = pl.program_id(1)

    @pl.when(j == 0)
    def _():
        m_ref[...] = jnp.full(m_ref.shape, -jnp.inf, dtype=m_ref.dtype)
        l_ref[...] = jnp.zeros(l_ref.shape, dtype=l_ref.dtype)

    s = _row_scores(enc_ref[...], g_ref[...], upcast)            # (TB, TS) f32
    s_ref[...] = s
    m_prev = m_ref[...]
    m_new = jnp.maximum(m_prev, jnp.max(s, axis=-1, keepdims=True))
    l_ref[...] = (l_ref[...] * jnp.exp(m_prev - m_new)
                  + jnp.sum(jnp.exp(s - m_new), axis=-1, keepdims=True))
    m_ref[...] = m_new


def _normalize_kernel(s_ref, m_ref, l_ref, out_ref):
    # Pass 2: probs = exp(scores - max) / sum-exp   over the tiny (B, S) array.
    p = jnp.exp(s_ref[...] - m_ref[...]) / l_ref[...]
    out_ref[...] = p.astype(out_ref.dtype)


def _project_hidden_kernel(h_ref, w_ref, g_ref):
    # g = h @ W_eff on the MXU.
    g_ref[...] = jnp.dot(h_ref[...], w_ref[...],
                         preferred_element_type=jnp.float32).astype(g_ref.dtype)


def _project_hidden(h, w_eff, vmem_limit):
    """g = h @ w_eff as one tiny single-block pallas_call.

    Keeping the projection out of the streaming scorer means the scorer pipeline
    carries no resident weight block at all; the projection is O(B*D^2) vs the
    scorer's O(B*S*D) HBM stream, so the extra launch is negligible.
    """
    Bh, Dh = h.shape
    # TODO(synk): tile over batch if B*D ever approaches the VMEM budget.
    return pl.pallas_call(
        _project_hidden_kernel,
        out_shape=jax.ShapeDtypeStruct((Bh, Dh), h.dtype),
        grid=(1,),
        in_specs=[pl.BlockSpec((Bh, Dh), lambda i: (0, 0)),
                  pl.BlockSpec((Dh, Dh), lambda i: (0, 0))],
        out_specs=pl.BlockSpec((Bh, Dh), lambda i: (0, 0)),
        compiler_params=pltpu.CompilerParams(vmem_limit_bytes=vmem_limit),
    )(h, w_eff)


# ----------------------------------------------------------------------------
# Wrapper
# ----------------------------------------------------------------------------
def attention_forward(hidden, encoder_outputs, method='dot', weight=None, bias=None,
                      *, s_block=None):
    """hidden: (B, D, 1), encoder_outputs: (B, S, D) -> attention probs (B, S, 1).

    `s_block` (testing hook): force the sequence-tiled online-softmax path with
    the given S block (must divide S and be a multiple of 128, or equal S).
    """
    B, S, D = encoder_outputs.shape
    out_dtype = jnp.promote_types(hidden.dtype, encoder_outputs.dtype)
    cdtype = encoder_outputs.dtype
    h = hidden[:, :, 0].astype(cdtype)                            # (B, D)

    vmem_cap, num_tc, bf16_vpu = _tpu_hw_info()
    vmem_limit, budget = _vmem_plan(vmem_cap)
    upcast = not (bf16_vpu and cdtype == jnp.bfloat16)

    if method == 'dot':
        g = h
    elif method in ('general', 'concat'):
        # NOTE: the literal PyTorch 'general'/'concat' matmuls raise at runtime for
        # hidden of shape (B, D, 1) (unsqueeze/expand shape bug); we implement the
        # intended semantics (hidden treated as a (B, D) vector).  Restructuring
        # (exact under softmax; per-row constants bias.h and h Wh^T h cancel):
        #   general: scores[b,s] = <E[b,s], h[b] @ W>
        #   concat : W = [W_h | W_e];  scores[b,s] = <E[b,s], h[b] @ W_e>
        if weight is None:
            raise Exception('[Attention]: method {!r} requires a weight'.format(method))
        w_eff = (weight if method == 'general' else weight[:, D:]).astype(cdtype)
        g = _project_hidden(h, w_eff, vmem_limit)
    else:
        raise Exception('[Attention]: Not supported method: {}'.format(method))

    if s_block is not None:
        assert S % s_block == 0 and (s_block % 128 == 0 or s_block == S), s_block

    enc_b = jnp.dtype(cdtype).itemsize
    out_b = jnp.dtype(out_dtype).itemsize
    tb, ts = _pick_tiling(B, S, D, enc_b, enc_b, out_b, budget, num_tc, s_block)
    cparams = pltpu.CompilerParams(
        dimension_semantics=("parallel",) if ts is None else ("parallel", "arbitrary"),
        vmem_limit_bytes=vmem_limit,
    )

    if ts is None:
        # Batch-blocked path: softmax over the full sequence inside the kernel.
        probs = pl.pallas_call(
            functools.partial(_softmax_scores_kernel, upcast=upcast),
            out_shape=jax.ShapeDtypeStruct((B, S), out_dtype),
            grid=(B // tb,),
            in_specs=[pl.BlockSpec((tb, S, D), lambda i: (i, 0, 0)),
                      pl.BlockSpec((tb, D), lambda i: (i, 0))],
            out_specs=pl.BlockSpec((tb, S), lambda i: (i, 0)),     # lane-dense seq axis
            compiler_params=cparams,
        )(encoder_outputs, g)
    else:
        # Sequence-tiled path: pass 1 streams the encoder exactly once, emitting raw
        # f32 scores + online (max, sum-exp) stats; pass 2 normalizes the (B, S)
        # scores (HBM traffic ~1/D of the encoder stream).
        grid = (B // tb, S // ts)
        scores, m, l = pl.pallas_call(
            functools.partial(_scores_online_kernel, upcast=upcast),
            out_shape=(jax.ShapeDtypeStruct((B, S), jnp.float32),
                       jax.ShapeDtypeStruct((B, 1), jnp.float32),
                       jax.ShapeDtypeStruct((B, 1), jnp.float32)),
            grid=grid,
            in_specs=[pl.BlockSpec((tb, ts, D), lambda i, j: (i, j, 0)),
                      pl.BlockSpec((tb, D), lambda i, j: (i, 0))],
            out_specs=(pl.BlockSpec((tb, ts), lambda i, j: (i, j)),
                       pl.BlockSpec((tb, 1), lambda i, j: (i, 0)),
                       pl.BlockSpec((tb, 1), lambda i, j: (i, 0))),
            compiler_params=cparams,
        )(encoder_outputs, g)
        probs = pl.pallas_call(
            _normalize_kernel,
            out_shape=jax.ShapeDtypeStruct((B, S), out_dtype),
            grid=grid,
            in_specs=[pl.BlockSpec((tb, ts), lambda i, j: (i, j)),
                      pl.BlockSpec((tb, 1), lambda i, j: (i, 0)),
                      pl.BlockSpec((tb, 1), lambda i, j: (i, 0))],
            out_specs=pl.BlockSpec((tb, ts), lambda i, j: (i, j)),
            compiler_params=cparams,
        )(scores, m, l)

    return probs[:, :, None]                                       # (B, S, 1)


# ----------------------------------------------------------------------------
# Plain-JAX reference (for a sanity check)
# ----------------------------------------------------------------------------
def reference_forward(hidden, encoder_outputs, method='dot', weight=None, bias=None):
    hp = jax.lax.Precision.HIGHEST
    h = hidden[:, :, 0]
    if method == 'dot':
        scores = jnp.einsum('bsd,bd->bs', encoder_outputs, h, precision=hp)
    elif method == 'general':
        energy = jnp.einsum('bsd,ed->bse', encoder_outputs, weight, precision=hp) + bias
        scores = jnp.einsum('bse,be->bs', energy, h, precision=hp)
    elif method == 'concat':
        h_exp = jnp.broadcast_to(h[:, None, :], encoder_outputs.shape)
        cat = jnp.concatenate([h_exp, encoder_outputs], axis=-1)
        energy = jnp.einsum('bsc,ec->bse', cat, weight, precision=hp) + bias
        scores = jnp.einsum('bse,be->bs', energy, h, precision=hp)
    else:
        raise Exception('[Attention]: Not supported method: {}'.format(method))
    return jax.nn.softmax(scores, axis=1)[:, :, None]


if __name__ == "__main__":
    key = jax.random.PRNGKey(0)

    def make_inputs(k, B, S, D):
        k1, k2, k3, k4, k5, k6 = jax.random.split(k, 6)
        hidden = jax.random.normal(k1, (B, D, 1), dtype=jnp.float32)
        enc = jax.random.normal(k2, (B, S, D), dtype=jnp.float32)
        bg = 1.0 / (D ** 0.5)
        w_general = jax.random.uniform(k3, (D, D), jnp.float32, -bg, bg)
        b_general = jax.random.uniform(k4, (D,), jnp.float32, -bg, bg)
        bc = 1.0 / ((2 * D) ** 0.5)
        w_concat = jax.random.uniform(k5, (D, 2 * D), jnp.float32, -bc, bc)
        b_concat = jax.random.uniform(k6, (D,), jnp.float32, -bc, bc)
        return hidden, enc, {'dot': (None, None),
                             'general': (w_general, b_general),
                             'concat': (w_concat, b_concat)}

    ok = True
    k0, k1 = jax.random.split(key)

    # Module-sized shapes: batch-blocked path, softmax fully in-kernel.
    B, S, D = 2, 8, 32
    hidden, enc, params = make_inputs(k0, B, S, D)
    for method in ('dot', 'general', 'concat'):
        w, b = params[method]
        out = jax.block_until_ready(attention_forward(hidden, enc, method, w, b))
        ref = reference_forward(hidden, enc, method, w, b)
        ok &= (out.shape == (B, S, 1))
        ok &= bool(jnp.allclose(out, ref, atol=1e-5, rtol=5e-3))
        ok &= bool(jnp.allclose(jnp.sum(out, axis=1), 1.0, atol=1e-4))

    # Force the sequence-tiled online-softmax path (used automatically when a
    # batch-blocked slab cannot fit the generation-aware VMEM budget).
    B, S, D = 8, 256, 128
    hidden, enc, params = make_inputs(k1, B, S, D)
    for method in ('dot', 'general'):
        w, b = params[method]
        out = jax.block_until_ready(
            attention_forward(hidden, enc, method, w, b, s_block=128))
        ref = reference_forward(hidden, enc, method, w, b)
        ok &= (out.shape == (B, S, 1))
        ok &= bool(jnp.allclose(out, ref, atol=1e-5, rtol=5e-3))
        ok &= bool(jnp.allclose(jnp.sum(out, axis=1), 1.0, atol=1e-4))

    print("KERNEL_OK" if ok else "KERNEL_MISMATCH")
</pallas_src>

<mosaic_0001>
module attributes {stable_mosaic.version = 11 : i64} {
  func.func @_softmax_scores_kernel(%arg0: i32, %arg1: memref<2x8x32xf32, #tpu.memory_space<vmem>>, %arg2: memref<2x32xf32, #tpu.memory_space<vmem>>, %arg3: memref<2x8xf32, #tpu.memory_space<vmem>>) attributes {dimension_semantics = [#tpu.dimension_semantics<parallel>], iteration_bounds = array<i64: 1>, scalar_prefetch = 0 : i64, scratch_operands = 0 : i64, tpu.core_type = #tpu.core_type<tc>, window_params = [{transform_indices = @transform_0, window_bounds = array<i64: 2, 8, 32>}, {transform_indices = @transform_1, window_bounds = array<i64: 2, 32>}, {transform_indices = @transform_2, window_bounds = array<i64: 2, 8>}]} {
    %c0 = arith.constant 0 : index
    %c0_0 = arith.constant 0 : index
    %c0_1 = arith.constant 0 : index
    %0 = vector.load %arg1[%c0, %c0_0, %c0_1] : memref<2x8x32xf32, #tpu.memory_space<vmem>>, vector<2x8x32xf32>
    %c0_2 = arith.constant 0 : index
    %c0_3 = arith.constant 0 : index
    %1 = vector.load %arg2[%c0_2, %c0_3] : memref<2x32xf32, #tpu.memory_space<vmem>>, vector<2x32xf32>
    %2 = vector.shape_cast %1 : vector<2x32xf32> to vector<2x1x32xf32>
    %3 = vector.broadcast %2 : vector<2x1x32xf32> to vector<2x8x32xf32>
    %4 = arith.mulf %0, %3 : vector<2x8x32xf32>
    %cst = arith.constant dense<0.000000e+00> : vector<2x8xf32>
    %5 = vector.multi_reduction <add>, %4, %cst [2] : vector<2x8x32xf32> to vector<2x8xf32>
    %cst_4 = arith.constant dense<0xFF800000> : vector<2xf32>
    %6 = vector.multi_reduction <maximumf>, %5, %cst_4 [1] : vector<2x8xf32> to vector<2xf32>
    %7 = vector.shape_cast %6 : vector<2xf32> to vector<2x1xf32>
    %8 = vector.broadcast %7 : vector<2x1xf32> to vector<2x8xf32>
    %9 = arith.subf %5, %8 : vector<2x8xf32>
    %10 = math.exp %9 : vector<2x8xf32>
    %cst_5 = arith.constant dense<0.000000e+00> : vector<2xf32>
    %11 = vector.multi_reduction <add>, %10, %cst_5 [1] : vector<2x8xf32> to vector<2xf32>
    %12 = vector.shape_cast %11 : vector<2xf32> to vector<2x1xf32>
    %13 = vector.broadcast %12 : vector<2x1xf32> to vector<2x8xf32>
    %14 = arith.divf %10, %13 : vector<2x8xf32>
    %c0_6 = arith.constant 0 : index
    %c0_7 = arith.constant 0 : index
    %15 = vector.load %arg3[%c0_6, %c0_7] : memref<2x8xf32, #tpu.memory_space<vmem>>, vector<2x8xf32>
    tpu.vector_store %arg3[%c0_6, %c0_7], %14 {strides = array<i32>} : memref<2x8xf32, #tpu.memory_space<vmem>>, vector<2x8xf32>,
    return
  }
  func.func @transform_0(%arg0: i32) -> (i32, i32, i32) {
    %c0_i32 = arith.constant 0 : i32
    %c0_i32_0 = arith.constant 0 : i32
    %c0_i32_1 = arith.constant 0 : i32
    return %arg0, %c0_i32, %c0_i32_0 : i32, i32, i32
  }
  func.func @transform_1(%arg0: i32) -> (i32, i32) {
    %c0_i32 = arith.constant 0 : i32
    %c0_i32_0 = arith.constant 0 : i32
    return %arg0, %c0_i32 : i32, i32
  }
  func.func @transform_2(%arg0: i32) -> (i32, i32) {
    %c0_i32 = arith.constant 0 : i32
    %c0_i32_0 = arith.constant 0 : i32
    return %arg0, %c0_i32 : i32, i32
  }
}

</mosaic_0001>

<llo_original>
// kernel: tpu_custom_call.1
$region0: #{tpu_custom_call.1}
  #allocation0 [shape = 'u32[]', space=smem, size = 0x4, offset = 0x4, fixed_abs, tag = 'smem constant byte address 0x4 - core index']
  #allocation1 [shape = 'u32[144,128]{1,0:T(1,128)}', space=vmem, size = 0x12000, scoped, tag = 'internal scratch']
  %s0 = inlined_call_operand.hbm [shape: f32[2,8,32], index: 0, kind: input, shape index: {}]
  %s1 = inlined_call_operand.hbm [shape: f32[2,32], index: 1, kind: input, shape index: {}]
  %s2 = inlined_call_operand.hbm [shape: f32[2,8], index: 2, kind: output, shape index: {}]
  %s3 = sld [smem:[#allocation0]]
  $region26: #{tpu_custom_call.1} parent=0
    _
  %s5 = ssub.s32 1, %s3
  %s6 = scalar_select 0, %s5, %s3
  $region1: #{tpu_custom_call.1} parent=0
    #allocation2 [shape = 'u8[8192]{0}', space=vmem, size = 0x2000, scoped, tag = 'input window, operand 0, single buffered']
    #allocation3 [shape = 's32[1]{0}', space=sflag, size = 0x4, scoped, tag = 'scoped memory for tpu_custom_call.1']
    #allocation4 [shape = 's32[1]{0}', space=sflag, size = 0x4, scoped, tag = 'scoped memory for tpu_custom_call.1']
    #allocation5 [shape = 'u8[1024]{0}', space=vmem, size = 0x400, scoped, tag = 'input window, operand 1, single buffered']
    #allocation6 [shape = 's32[1]{0}', space=sflag, size = 0x4, scoped, tag = 'scoped memory for tpu_custom_call.1']
    #allocation7 [shape = 'u8[1024]{0}', space=vmem, size = 0x400, scoped, tag = 'output window, operand 0, single buffered']
    %7 = vsyncpa [#allocation3], 0
    %8 = vsyncpa [#allocation6], 0
    %9 = vsyncpa [#allocation4], 0
    // Predicated region
    $region2: #{tpu_custom_call.1} parent=1 // pred_check
      _
    $region3: #{tpu_custom_call.1} parent=1 // pred_check_branch
      %11 = sbr.rel (0) target = $region5
    $region4: #{tpu_custom_call.1} parent=1 // pred_region
      %s13 = ssub.s32 256, 256
      %14 = vsyncadd [#allocation3], %s13
      %s15 = sshll.u32 [#allocation2], 4
      %s16 = int_to_ptr.vmem [resolvable:$true] %s15
      %21 = dma.hbm_to_vmem [thread:$0]  %s0, 256, %s16, [#allocation3], 128, 128, 8
    $region5: #{tpu_custom_call.1} parent=1 // pred_fallthru
      _
    // Predicated region
    $region6: #{tpu_custom_call.1} parent=1 // pred_check
      _
    $region7: #{tpu_custom_call.1} parent=1 // pred_check_branch
      %23 = sbr.rel (0) target = $region9
    $region8: #{tpu_custom_call.1} parent=1 // pred_region
      %s25 = ssub.s32 32, 32
      %26 = vsyncadd [#allocation6], %s25
      %s28 = sshll.u32 [#allocation5], 4
      %s29 = int_to_ptr.vmem [resolvable:$true] %s28
      %31 = dma.hbm_to_vmem [thread:$0]  %s1, 32, %s29, [#allocation6]
    $region9: #{tpu_custom_call.1} parent=1 // pred_fallthru
      _
    // Predicated region
    $region10: #{tpu_custom_call.1} parent=1 // pred_check
      _
    $region11: #{tpu_custom_call.1} parent=1 // pred_check_branch
      %33 = sbr.rel (0) target = $region13
    $region12: #{tpu_custom_call.1} parent=1 // pred_region
      %34 = dma.done [#allocation3], 256
    $region13: #{tpu_custom_call.1} parent=1 // pred_fallthru
      _
    // Predicated region
    $region14: #{tpu_custom_call.1} parent=1 // pred_check
      _
    $region15: #{tpu_custom_call.1} parent=1 // pred_check_branch
      %36 = sbr.rel (0) target = $region17
    $region16: #{tpu_custom_call.1} parent=1 // pred_region
      %37 = dma.done [#allocation6], 32
    $region17: #{tpu_custom_call.1} parent=1 // pred_fallthru
      _
    %v38 = vld [vmem:[#allocation2] sm:$0xff]
    %v39 = vld [vmem:[#allocation2 + $0x8] sm:$0xff]
    %v40 = vld [vmem:[#allocation5] sm:$0x3]
    %v43 = vunpack.c.l.s4 1966171168
    %v44 = vunpack.c.0.s8 %v43
    %v45 = vlaneseq
    %v46 = vshrl.u32 %v45, 7
    %v47 = vsub.s32 %v44, %v46
    %v48 = vrot.slane %v40, %v47
    %v49 = vcombine.high %v48, %v48
    %v51 = vunpack.c.l.s4 1966171168
    %v52 = vunpack.c.0.s8 %v51
    %v53 = vlaneseq
    %v54 = vshrl.u32 %v53, 7
    %v55 = vsub.s32 %v52, %v54
    %v56 = vrot.slane %v48, %v55
    %v58 = vunpack.c.l.s4 1966171168
    %v59 = vunpack.c.0.s8 %v58
    %v60 = vlaneseq
    %v61 = vshrl.u32 %v60, 7
    %v62 = vsub.s32 %v59, %v61
    %v63 = vrot.slane %v49, %v62
    %v64 = vlaneseq
    %v65 = vshrl.u32 %v64, 7
    %v66 = vsub.s32 0, %v65
    %v67 = vrot.slane %v56, %v66
    %v68 = vlaneseq
    %v69 = vshrl.u32 %v68, 7
    %v70 = vsub.s32 0, %v69
    %v71 = vrot.slane %v63, %v70
    %v74 = vmul.f32 %v38, %v67
    %v75 = vmul.f32 %v39, %v71
    %vm76 = vcmask 261120
    %v77 = vsel %vm76, %v74, 0.0
    %78 = vadd.xlane.f32.xlu0 %v77
    %v79 = vpop.xlane.xlu0 %78
    %v80 = vsel %vm76, %v75, 0.0
    %81 = vadd.xlane.f32.xlu0 %v80
    %v82 = vpop.xlane.xlu0 %81
    %v85 = vlaneseq
    %v86 = vand.u32 %v85, 127
    %v87 = vlaneseq
    %v88 = vshrl.u32 %v87, 7
    %v89 = vsub.s32 %v86, %v88
    %v90 = vrot.slane %v79, %v89
    %v91 = vlaneseq
    %v92 = vshrl.u32 %v91, 7
    %v93 = vsub.s32 %v86, %v92
    %v94 = vrot.slane %v82, %v93
    %vm95 = vcmask 1041409
    %v96 = vsel %vm95, %v94, %v90
    %vm98 = vcmask 58368
    %v99 = vsel %vm98, %v96, -inf
    %100 = vmax.xlane.f32.xlu0 %v99
    %v101 = vpop.xlane.xlu0 %100
    %v103 = vlaneseq
    %v104 = vshrl.u32 %v103, 7
    %v105 = vsub.s32 0, %v104
    %v106 = vrot.slane %v101, %v105
    %v107 = vlaneseq
    %v108 = vshrl.u32 %v107, 7
    %v109 = vsub.s32 1, %v108
    %v110 = vrot.slane %v101, %v109
    %v113 = vsub.f32 %v79, %v106
    %v114 = vsub.f32 %v82, %v110
    %v115 = vmul.f32 %v113, 1.442695
    %v116 = vpow.pop %v115
    %v117 = vmul.f32 %v114, 1.442695
    %v118 = vpow.pop %v117
    %121 = vset.pattern.permute.xlu0 0
    %122 = vperm.xlu0 %121, %v116
    %v123 = vpop.permute.xlu0 %122
    %124 = vset.pattern.permute.xlu0 0
    %125 = vperm.xlu0 %124, %v118
    %v126 = vpop.permute.xlu0 %125
    %v127 = vlaneseq
    %v128 = vshrl.u32 %v127, 7
    %v129 = vsub.s32 %v86, %v128
    %v130 = vrot.slane %v123, %v129
    %v131 = vlaneseq
    %v132 = vshrl.u32 %v131, 7
    %v133 = vsub.s32 %v86, %v132
    %v134 = vrot.slane %v126, %v133
    %v135 = vsel %vm95, %v134, %v130
    %v137 = vsel %vm98, %v135, 0.0
    %138 = vadd.xlane.f32.xlu0 %v137
    %v139 = vpop.xlane.xlu0 %138
    %v141 = vlaneseq
    %v142 = vshrl.u32 %v141, 7
    %v143 = vsub.s32 0, %v142
    %v144 = vrot.slane %v139, %v143
    %v145 = vlaneseq
    %v146 = vshrl.u32 %v145, 7
    %v147 = vsub.s32 1, %v146
    %v148 = vrot.slane %v139, %v147
    %v151 = vrcp.pop %v144
    %v152 = vmul.f32 %v116, %v151
    %v153 = vrcp.pop %v148
    %v154 = vmul.f32 %v118, %v153
    %157 = vset.pattern.permute.xlu0 0
    %158 = vperm.xlu0 %157, %v152
    %v159 = vpop.permute.xlu0 %158
    %160 = vset.pattern.permute.xlu0 0
    %161 = vperm.xlu0 %160, %v154
    %v162 = vpop.permute.xlu0 %161
    %v163 = vlaneseq
    %v164 = vshrl.u32 %v163, 7
    %v165 = vsub.s32 %v86, %v164
    %v166 = vrot.slane %v159, %v165
    %v167 = vlaneseq
    %v168 = vshrl.u32 %v167, 7
    %v169 = vsub.s32 %v86, %v168
    %v170 = vrot.slane %v162, %v169
    %v171 = vsel %vm95, %v170, %v166
    %173 = vst.msk [vmem:[#allocation7] sm:$0x3] %vm98, %v171
    // Predicated region
    $region18: #{tpu_custom_call.1} parent=1 // pred_check
      _
    $region19: #{tpu_custom_call.1} parent=1 // pred_check_branch
      %175 = sbr.rel (0) target = $region21
    $region20: #{tpu_custom_call.1} parent=1 // pred_region
      %s177 = ssub.s32 32, 32
      %178 = vsyncadd [#allocation4], %s177
      %s180 = sshll.u32 [#allocation7], 4
      %s181 = int_to_ptr.vmem [resolvable:$true] %s180
      %183 = dma.vmem_to_hbm [thread:$0]  %s181, 32, %s2, [#allocation4]
    $region21: #{tpu_custom_call.1} parent=1 // pred_fallthru
      _
    // Predicated region
    $region22: #{tpu_custom_call.1} parent=1 // pred_check
      _
    $region23: #{tpu_custom_call.1} parent=1 // pred_check_branch
      %185 = sbr.rel (0) target = $region25
    $region24: #{tpu_custom_call.1} parent=1 // pred_region
      %186 = dma.done [#allocation4], 32
    $region25: #{tpu_custom_call.1} parent=1 // pred_fallthru
      _
    %187 = vsyncpa [#allocation3], 1
    %188 = vsyncpa [#allocation6], 1
    %189 = vsyncpa [#allocation4], 1

</llo_original>
